<compile_context>
chip_gen: v6e
topology: v6e:2x2x1
jax: 0.10.0
libtpu: 0.0.40
codegen_flags: <defaults>
</compile_context>

<pallas_src>
import functools

import jax
import jax.numpy as jnp
from jax.experimental import pallas as pl
from jax.experimental.pallas import tpu as pltpu

BN_EPS = 1e-5
LANE = 128


def _round_up(x, m):
    return ((x + m - 1) // m) * m


def _make_fused_mlp_kernel(num_hidden):
    """Kernel: num_hidden x (Linear -> BatchNorm1d(batch stats) -> ReLU),
    then a final Linear with bias. All operands are whole-array VMEM blocks,
    so the inter-layer activation never leaves VMEM."""

    def kernel(*refs):
        # refs = x, (w_l, gb_l) * num_hidden, w_out, b_out, o
        x_ref = refs[0]
        o_ref = refs[-1]
        h = x_ref[...]
        idx = 1
        for _ in range(num_hidden):
            w_ref = refs[idx]
            gb_ref = refs[idx + 1]
            idx += 2
            # Linear (hidden bias omitted: exactly cancelled by the BN mean).
            z = jnp.dot(h, w_ref[...], preferred_element_type=jnp.float32)
            # BatchNorm1d, training mode: biased variance over the batch axis.
            inv_n = 1.0 / z.shape[0]
            mean = jnp.sum(z, axis=0, keepdims=True) * inv_n
            centered = z - mean
            var = jnp.sum(centered * centered, axis=0, keepdims=True) * inv_n
            gb = gb_ref[...]                                    # (2, H): gamma, beta
            scale = jax.lax.rsqrt(var + BN_EPS) * gb[0:1, :]    # fold inv_std into gamma
            h = jnp.maximum(centered * scale + gb[1:2, :], 0.0)  # ReLU
        w_ref = refs[idx]
        b_ref = refs[idx + 1]
        z = jnp.dot(h, w_ref[...], preferred_element_type=jnp.float32)
        o_ref[...] = (z + b_ref[...]).astype(o_ref.dtype)

    return kernel


def init_mlp_params(key, num_layers, input_dim, hidden_dim, output_dim):
    """nn.Linear-style init (uniform +/- 1/sqrt(fan_in)) with weights stored
    [in_dim, out_dim] and zero-padded to lane-dense (multiple-of-128) feature
    dims. BatchNorm gamma=1, beta=0 packed as (2, H_pad). Hidden-layer biases
    are not materialized (they are exactly cancelled by the BatchNorm mean)."""
    if num_layers < 1:
        raise ValueError("number of layers should be positive!")

    in_p = _round_up(input_dim, LANE)
    hid_p = _round_up(hidden_dim, LANE)
    out_p = _round_up(output_dim, LANE)

    def _linear(k, fan_in, fan_out, pad_in, pad_out):
        kw, kb = jax.random.split(k)
        bound = 1.0 / (fan_in ** 0.5)
        w = jax.random.uniform(kw, (fan_in, fan_out), jnp.float32, -bound, bound)
        b = jax.random.uniform(kb, (fan_out,), jnp.float32, -bound, bound)
        w = jnp.pad(w, ((0, pad_in - fan_in), (0, pad_out - fan_out)))
        b = jnp.pad(b, (0, pad_out - fan_out)).reshape(1, pad_out)
        return w, b

    params = {"w_hidden": [], "gb_hidden": []}
    if num_layers == 1:
        key, k = jax.random.split(key)
        w, b = _linear(k, input_dim, output_dim, in_p, out_p)
        params["w_out"], params["b_out"] = w, b
        return params

    dims = [(input_dim, hidden_dim, in_p, hid_p)]
    dims += [(hidden_dim, hidden_dim, hid_p, hid_p)] * (num_layers - 2)
    for fan_in, fan_out, pin, pout in dims:
        key, k = jax.random.split(key)
        w, _ = _linear(k, fan_in, fan_out, pin, pout)   # hidden bias dropped (BN cancels it)
        params["w_hidden"].append(w)
        gb = jnp.concatenate(
            [jnp.ones((1, pout), jnp.float32), jnp.zeros((1, pout), jnp.float32)], axis=0)
        params["gb_hidden"].append(gb)

    key, k = jax.random.split(key)
    w, b = _linear(k, hidden_dim, output_dim, hid_p, out_p)
    params["w_out"], params["b_out"] = w, b
    return params


@functools.partial(jax.jit, static_argnames=("output_dim",))
def mlp_forward(params, x, output_dim):
    w_hidden = params["w_hidden"]
    gb_hidden = params["gb_hidden"]
    w_out, b_out = params["w_out"], params["b_out"]
    num_hidden = len(w_hidden)

    din_p = (w_hidden[0] if num_hidden else w_out).shape[0]
    n, din = x.shape
    x_p = x if din == din_p else jnp.pad(x, ((0, 0), (0, din_p - din)))

    inputs = [x_p]
    for w, gb in zip(w_hidden, gb_hidden):
        inputs += [w, gb]
    inputs += [w_out, b_out]

    vmem = pl.BlockSpec(memory_space=pltpu.MemorySpace.VMEM)
    out_padded = pl.pallas_call(
        _make_fused_mlp_kernel(num_hidden),
        out_shape=jax.ShapeDtypeStruct((n, w_out.shape[1]), jnp.float32),
        in_specs=[vmem] * len(inputs),
        out_specs=vmem,
    )(*inputs)
    return out_padded[:, :output_dim]


def _reference_forward(params, x, output_dim):
    """Pure-JAX reference of the same math (for a correctness check)."""
    num_hidden = len(params["w_hidden"])
    din_p = (params["w_hidden"][0] if num_hidden else params["w_out"]).shape[0]
    h = jnp.pad(x, ((0, 0), (0, din_p - x.shape[1])))
    for w, gb in zip(params["w_hidden"], params["gb_hidden"]):
        z = h @ w
        mean = z.mean(axis=0, keepdims=True)
        var = ((z - mean) ** 2).mean(axis=0, keepdims=True)
        h = jnp.maximum((z - mean) * jax.lax.rsqrt(var + BN_EPS) * gb[0:1] + gb[1:2], 0.0)
    out = h @ params["w_out"] + params["b_out"]
    return out[:, :output_dim]


if __name__ == "__main__":
    num_layers = 3
    batch = 8
    input_dim = 16
    hidden_dim = 32
    output_dim = 8

    key = jax.random.PRNGKey(0)
    key, kx = jax.random.split(key)
    x = jax.random.normal(kx, (batch, input_dim), jnp.float32)

    params = init_mlp_params(key, num_layers, input_dim, hidden_dim, output_dim)

    out = mlp_forward(params, x, output_dim)
    jax.block_until_ready(out)
    assert out.shape == (batch, output_dim)

    ref = _reference_forward(params, x, output_dim)
    assert jnp.allclose(out, ref, rtol=1e-4, atol=1e-4), "kernel mismatch vs reference"

    print("KERNEL_OK")
</pallas_src>

<mosaic_0001>
module attributes {stable_mosaic.version = 11 : i64} {
  func.func @kernel(%arg0: memref<8x128xf32, #tpu.memory_space<vmem>>, %arg1: memref<128x128xf32, #tpu.memory_space<vmem>>, %arg2: memref<2x128xf32, #tpu.memory_space<vmem>>, %arg3: memref<128x128xf32, #tpu.memory_space<vmem>>, %arg4: memref<2x128xf32, #tpu.memory_space<vmem>>, %arg5: memref<128x128xf32, #tpu.memory_space<vmem>>, %arg6: memref<1x128xf32, #tpu.memory_space<vmem>>, %arg7: memref<8x128xf32, #tpu.memory_space<vmem>>) attributes {dimension_semantics = [], scalar_prefetch = 0 : i64, scratch_operands = 0 : i64, tpu.core_type = #tpu.core_type<tc>} {
    %c0 = arith.constant 0 : index
    %c0_0 = arith.constant 0 : index
    %0 = vector.load %arg0[%c0, %c0_0] : memref<8x128xf32, #tpu.memory_space<vmem>>, vector<8x128xf32>
    %c0_1 = arith.constant 0 : index
    %c0_2 = arith.constant 0 : index
    %1 = vector.load %arg1[%c0_1, %c0_2] : memref<128x128xf32, #tpu.memory_space<vmem>>, vector<128x128xf32>
    %cst = arith.constant dense<0.000000e+00> : vector<8x128xf32>
    %2 = tpu.matmul %0, %1, %cst {dimension_numbers = #tpu.dot_dimension_numbers<[1], [0], [0], [1], [0, 0, 1, 1], [], []>} : vector<8x128xf32>, vector<128x128xf32>, vector<8x128xf32> -> vector<8x128xf32>
    %cst_3 = arith.constant dense<0.000000e+00> : vector<128xf32>
    %3 = vector.multi_reduction <add>, %2, %cst_3 [0] : vector<8x128xf32> to vector<128xf32>
    %4 = vector.shape_cast %3 : vector<128xf32> to vector<1x128xf32>
    %cst_4 = arith.constant 1.250000e-01 : f32
    %5 = vector.broadcast %cst_4 : f32 to vector<1x128xf32>
    %6 = arith.mulf %4, %5 : vector<1x128xf32>
    %7 = vector.broadcast %6 : vector<1x128xf32> to vector<8x128xf32>
    %8 = arith.subf %2, %7 : vector<8x128xf32>
    %9 = arith.mulf %8, %8 : vector<8x128xf32>
    %cst_5 = arith.constant dense<0.000000e+00> : vector<128xf32>
    %10 = vector.multi_reduction <add>, %9, %cst_5 [0] : vector<8x128xf32> to vector<128xf32>
    %11 = vector.shape_cast %10 : vector<128xf32> to vector<1x128xf32>
    %cst_6 = arith.constant 1.250000e-01 : f32
    %12 = vector.broadcast %cst_6 : f32 to vector<1x128xf32>
    %13 = arith.mulf %11, %12 : vector<1x128xf32>
    %c0_7 = arith.constant 0 : index
    %c0_8 = arith.constant 0 : index
    %14 = vector.load %arg2[%c0_7, %c0_8] : memref<2x128xf32, #tpu.memory_space<vmem>>, vector<2x128xf32>
    %cst_9 = arith.constant 9.99999974E-6 : f32
    %15 = vector.broadcast %cst_9 : f32 to vector<1x128xf32>
    %16 = arith.addf %13, %15 : vector<1x128xf32>
    %17 = math.rsqrt %16 : vector<1x128xf32>
    %18 = vector.extract_strided_slice %14 {offsets = [0, 0], sizes = [1, 128], strides = [1, 1]} : vector<2x128xf32> to vector<1x128xf32>
    %19 = arith.mulf %17, %18 : vector<1x128xf32>
    %20 = vector.broadcast %19 : vector<1x128xf32> to vector<8x128xf32>
    %21 = arith.mulf %8, %20 : vector<8x128xf32>
    %22 = vector.extract_strided_slice %14 {offsets = [1, 0], sizes = [1, 128], strides = [1, 1]} : vector<2x128xf32> to vector<1x128xf32>
    %23 = vector.broadcast %22 : vector<1x128xf32> to vector<8x128xf32>
    %24 = arith.addf %21, %23 : vector<8x128xf32>
    %cst_10 = arith.constant 0.000000e+00 : f32
    %25 = vector.broadcast %cst_10 : f32 to vector<8x128xf32>
    %26 = arith.maximumf %24, %25 : vector<8x128xf32>
    %c0_11 = arith.constant 0 : index
    %c0_12 = arith.constant 0 : index
    %27 = vector.load %arg3[%c0_11, %c0_12] : memref<128x128xf32, #tpu.memory_space<vmem>>, vector<128x128xf32>
    %cst_13 = arith.constant dense<0.000000e+00> : vector<8x128xf32>
    %28 = tpu.matmul %26, %27, %cst_13 {dimension_numbers = #tpu.dot_dimension_numbers<[1], [0], [0], [1], [0, 0, 1, 1], [], []>} : vector<8x128xf32>, vector<128x128xf32>, vector<8x128xf32> -> vector<8x128xf32>
    %cst_14 = arith.constant dense<0.000000e+00> : vector<128xf32>
    %29 = vector.multi_reduction <add>, %28, %cst_14 [0] : vector<8x128xf32> to vector<128xf32>
    %30 = vector.shape_cast %29 : vector<128xf32> to vector<1x128xf32>
    %cst_15 = arith.constant 1.250000e-01 : f32
    %31 = vector.broadcast %cst_15 : f32 to vector<1x128xf32>
    %32 = arith.mulf %30, %31 : vector<1x128xf32>
    %33 = vector.broadcast %32 : vector<1x128xf32> to vector<8x128xf32>
    %34 = arith.subf %28, %33 : vector<8x128xf32>
    %35 = arith.mulf %34, %34 : vector<8x128xf32>
    %cst_16 = arith.constant dense<0.000000e+00> : vector<128xf32>
    %36 = vector.multi_reduction <add>, %35, %cst_16 [0] : vector<8x128xf32> to vector<128xf32>
    %37 = vector.shape_cast %36 : vector<128xf32> to vector<1x128xf32>
    %cst_17 = arith.constant 1.250000e-01 : f32
    %38 = vector.broadcast %cst_17 : f32 to vector<1x128xf32>
    %39 = arith.mulf %37, %38 : vector<1x128xf32>
    %c0_18 = arith.constant 0 : index
    %c0_19 = arith.constant 0 : index
    %40 = vector.load %arg4[%c0_18, %c0_19] : memref<2x128xf32, #tpu.memory_space<vmem>>, vector<2x128xf32>
    %cst_20 = arith.constant 9.99999974E-6 : f32
    %41 = vector.broadcast %cst_20 : f32 to vector<1x128xf32>
    %42 = arith.addf %39, %41 : vector<1x128xf32>
    %43 = math.rsqrt %42 : vector<1x128xf32>
    %44 = vector.extract_strided_slice %40 {offsets = [0, 0], sizes = [1, 128], strides = [1, 1]} : vector<2x128xf32> to vector<1x128xf32>
    %45 = arith.mulf %43, %44 : vector<1x128xf32>
    %46 = vector.broadcast %45 : vector<1x128xf32> to vector<8x128xf32>
    %47 = arith.mulf %34, %46 : vector<8x128xf32>
    %48 = vector.extract_strided_slice %40 {offsets = [1, 0], sizes = [1, 128], strides = [1, 1]} : vector<2x128xf32> to vector<1x128xf32>
    %49 = vector.broadcast %48 : vector<1x128xf32> to vector<8x128xf32>
    %50 = arith.addf %47, %49 : vector<8x128xf32>
    %cst_21 = arith.constant 0.000000e+00 : f32
    %51 = vector.broadcast %cst_21 : f32 to vector<8x128xf32>
    %52 = arith.maximumf %50, %51 : vector<8x128xf32>
    %c0_22 = arith.constant 0 : index
    %c0_23 = arith.constant 0 : index
    %53 = vector.load %arg5[%c0_22, %c0_23] : memref<128x128xf32, #tpu.memory_space<vmem>>, vector<128x128xf32>
    %cst_24 = arith.constant dense<0.000000e+00> : vector<8x128xf32>
    %54 = tpu.matmul %52, %53, %cst_24 {dimension_numbers = #tpu.dot_dimension_numbers<[1], [0], [0], [1], [0, 0, 1, 1], [], []>} : vector<8x128xf32>, vector<128x128xf32>, vector<8x128xf32> -> vector<8x128xf32>
    %c0_25 = arith.constant 0 : index
    %c0_26 = arith.constant 0 : index
    %55 = vector.load %arg6[%c0_25, %c0_26] : memref<1x128xf32, #tpu.memory_space<vmem>>, vector<1x128xf32>
    %56 = vector.broadcast %55 : vector<1x128xf32> to vector<8x128xf32>
    %57 = arith.addf %54, %56 : vector<8x128xf32>
    %c0_27 = arith.constant 0 : index
    %c0_28 = arith.constant 0 : index
    %58 = vector.load %arg7[%c0_27, %c0_28] : memref<8x128xf32, #tpu.memory_space<vmem>>, vector<8x128xf32>
    tpu.vector_store %arg7[%c0_27, %c0_28], %57 {strides = array<i32>} : memref<8x128xf32, #tpu.memory_space<vmem>>, vector<8x128xf32>,
    return
  }
}

</mosaic_0001>

<llo_original>
// kernel: mlp_forward.1
$region0: #{mlp_forward.1}
  #allocation0 [shape = 'u32[]', space=smem, size = 0x4, offset = 0x4, fixed_abs, tag = 'smem constant byte address 0x4 - core index']
  #allocation1 [shape = 'u32[144,128]{1,0:T(1,128)}', space=vmem, size = 0x12000, scoped, tag = 'internal scratch']
  %s0 = inlined_call_operand.vmem [shape: f32[8,128], index: 0, kind: input, shape index: {}]
  %s1 = inlined_call_operand.hbm [shape: f32[128,128], index: 1, kind: input, shape index: {}]
  %s2 = inlined_call_operand.vmem [shape: f32[2,128], index: 2, kind: input, shape index: {}]
  %s3 = inlined_call_operand.hbm [shape: f32[128,128], index: 3, kind: input, shape index: {}]
  %s4 = inlined_call_operand.vmem [shape: f32[2,128], index: 4, kind: input, shape index: {}]
  %s5 = inlined_call_operand.hbm [shape: f32[128,128], index: 5, kind: input, shape index: {}]
  %s6 = inlined_call_operand.vmem [shape: f32[1,128], index: 6, kind: input, shape index: {}]
  %s7 = inlined_call_operand.hbm [shape: f32[8,128], index: 7, kind: output, shape index: {}]
  %s8 = sld [smem:[#allocation0]]
  $region50: #{mlp_forward.1} parent=0
    _
  %s10 = ssub.s32 1, %s8
  %s11 = scalar_select 0, %s10, %s8
  $region1: #{mlp_forward.1} parent=0
    #allocation2 [shape = 'u8[65536]{0}', space=vmem, size = 0x10000, scoped, tag = 'input window, operand 1, single buffered']
    #allocation3 [shape = 's32[1]{0}', space=sflag, size = 0x4, scoped, tag = 'scoped memory for mlp_forward.1']
    #allocation4 [shape = 's32[1]{0}', space=sflag, size = 0x4, scoped, tag = 'scoped memory for mlp_forward.1']
    #allocation5 [shape = 'u8[65536]{0}', space=vmem, size = 0x10000, scoped, tag = 'input window, operand 3, single buffered']
    #allocation6 [shape = 's32[1]{0}', space=sflag, size = 0x4, scoped, tag = 'scoped memory for mlp_forward.1']
    #allocation7 [shape = 'u8[65536]{0}', space=vmem, size = 0x10000, scoped, tag = 'input window, operand 5, single buffered']
    #allocation8 [shape = 'u8[4096]{0}', space=vmem, size = 0x1000, scoped, tag = 'output window, operand 0, single buffered']
    %12 = vsyncpa [#allocation3], 0
    %13 = vsyncpa [#allocation6], 0
    %14 = vsyncpa [#allocation4], 0
    // Predicated region
    $region2: #{mlp_forward.1} parent=1 // pred_check
      _
    $region3: #{mlp_forward.1} parent=1 // pred_check_branch
      %16 = sbr.rel (0) target = $region5
    $region4: #{mlp_forward.1} parent=1 // pred_region
      _
    $region5: #{mlp_forward.1} parent=1 // pred_fallthru
      _
    // Predicated region
    $region6: #{mlp_forward.1} parent=1 // pred_check
      _
    $region7: #{mlp_forward.1} parent=1 // pred_check_branch
      %18 = sbr.rel (0) target = $region9
    $region8: #{mlp_forward.1} parent=1 // pred_region
      %s20 = ssub.s32 2048, 2048
      %21 = vsyncadd [#allocation3], %s20
      %s22 = sshll.u32 [#allocation2], 4
      %s23 = int_to_ptr.vmem [resolvable:$true] %s22
      %28 = dma.hbm_to_vmem [thread:$0]  %s1, 2048, %s23, [#allocation3], 128, 128, 8
    $region9: #{mlp_forward.1} parent=1 // pred_fallthru
      _
    // Predicated region
    $region10: #{mlp_forward.1} parent=1 // pred_check
      _
    $region11: #{mlp_forward.1} parent=1 // pred_check_branch
      %30 = sbr.rel (0) target = $region13
    $region12: #{mlp_forward.1} parent=1 // pred_region
      _
    $region13: #{mlp_forward.1} parent=1 // pred_fallthru
      _
    // Predicated region
    $region14: #{mlp_forward.1} parent=1 // pred_check
      _
    $region15: #{mlp_forward.1} parent=1 // pred_check_branch
      %32 = sbr.rel (0) target = $region17
    $region16: #{mlp_forward.1} parent=1 // pred_region
      %s34 = ssub.s32 2048, 2048
      %35 = vsyncadd [#allocation6], %s34
      %s36 = sshll.u32 [#allocation5], 4
      %s37 = int_to_ptr.vmem [resolvable:$true] %s36
      %42 = dma.hbm_to_vmem [thread:$0]  %s3, 2048, %s37, [#allocation6], 128, 128, 8
    $region17: #{mlp_forward.1} parent=1 // pred_fallthru
      _
    // Predicated region
    $region18: #{mlp_forward.1} parent=1 // pred_check
      _
    $region19: #{mlp_forward.1} parent=1 // pred_check_branch
      %44 = sbr.rel (0) target = $region21
    $region20: #{mlp_forward.1} parent=1 // pred_region
      _
    $region21: #{mlp_forward.1} parent=1 // pred_fallthru
      _
    // Predicated region
    $region22: #{mlp_forward.1} parent=1 // pred_check
      _
    $region23: #{mlp_forward.1} parent=1 // pred_check_branch
      %46 = sbr.rel (0) target = $region25
    $region24: #{mlp_forward.1} parent=1 // pred_region
      %s48 = ssub.s32 2048, 2048
      %49 = vsyncadd [#allocation6], %s48
      %s50 = sshll.u32 [#allocation7], 4
      %s51 = int_to_ptr.vmem [resolvable:$true] %s50
      %56 = dma.hbm_to_vmem [thread:$0]  %s5, 2048, %s51, [#allocation6], 128, 128, 8
    $region25: #{mlp_forward.1} parent=1 // pred_fallthru
      _
    // Predicated region
    $region26: #{mlp_forward.1} parent=1 // pred_check
      _
    $region27: #{mlp_forward.1} parent=1 // pred_check_branch
      %58 = sbr.rel (0) target = $region29
    $region28: #{mlp_forward.1} parent=1 // pred_region
      _
    $region29: #{mlp_forward.1} parent=1 // pred_fallthru
      _
    // Predicated region
    $region30: #{mlp_forward.1} parent=1 // pred_check
      _
    $region31: #{mlp_forward.1} parent=1 // pred_check_branch
      %60 = sbr.rel (0) target = $region33
    $region32: #{mlp_forward.1} parent=1 // pred_region
      %61 = dma.done [#allocation3], 2048
    $region33: #{mlp_forward.1} parent=1 // pred_fallthru
      _
    // Predicated region
    $region34: #{mlp_forward.1} parent=1 // pred_check
      _
    $region35: #{mlp_forward.1} parent=1 // pred_check_branch
      %63 = sbr.rel (0) target = $region37
    $region36: #{mlp_forward.1} parent=1 // pred_region
      %64 = dma.done [#allocation6], 2048
    $region37: #{mlp_forward.1} parent=1 // pred_fallthru
      _
    // Predicated region
    $region38: #{mlp_forward.1} parent=1 // pred_check
      _
    $region39: #{mlp_forward.1} parent=1 // pred_check_branch
      %66 = sbr.rel (0) target = $region41
    $region40: #{mlp_forward.1} parent=1 // pred_region
      %67 = dma.done [#allocation6], 2048
    $region41: #{mlp_forward.1} parent=1 // pred_fallthru
      _
    %v68 = vld [vmem:[%s0] sm:$0xff]
    %v69 = vld [vmem:[#allocation2] sm:$0xff]
    %v70 = vld [vmem:[#allocation2 + $0x8] sm:$0xff]
    %v71 = vld [vmem:[#allocation2 + $0x10] sm:$0xff]
    %v72 = vld [vmem:[#allocation2 + $0x18] sm:$0xff]
    %v73 = vld [vmem:[#allocation2 + $0x20] sm:$0xff]
    %v74 = vld [vmem:[#allocation2 + $0x28] sm:$0xff]
    %v75 = vld [vmem:[#allocation2 + $0x30] sm:$0xff]
    %v76 = vld [vmem:[#allocation2 + $0x38] sm:$0xff]
    %v77 = vld [vmem:[#allocation2 + $0x40] sm:$0xff]
    %v78 = vld [vmem:[#allocation2 + $0x48] sm:$0xff]
    %v79 = vld [vmem:[#allocation2 + $0x50] sm:$0xff]
    %v80 = vld [vmem:[#allocation2 + $0x58] sm:$0xff]
    %v81 = vld [vmem:[#allocation2 + $0x60] sm:$0xff]
    %v82 = vld [vmem:[#allocation2 + $0x68] sm:$0xff]
    %v83 = vld [vmem:[#allocation2 + $0x70] sm:$0xff]
    %v84 = vld [vmem:[#allocation2 + $0x78] sm:$0xff]
    %85 = vmatprep.subr.mxu0 0.0
    %86 = vmatpush1.msra.mxu0 %v84
    %87 = vmatprep.subr.mxu0 0.0
    %88 = vmatpush1.msra.mxu0 %v83
    %89 = vmatprep.subr.mxu0 0.0
    %90 = vmatpush1.msra.mxu0 %v82
    %91 = vmatprep.subr.mxu0 0.0
    %92 = vmatpush1.msra.mxu0 %v81
    %93 = vmatprep.subr.mxu0 0.0
    %94 = vmatpush1.msra.mxu0 %v80
    %95 = vmatprep.subr.mxu0 0.0
    %96 = vmatpush1.msra.mxu0 %v79
    %97 = vmatprep.subr.mxu0 0.0
    %98 = vmatpush1.msra.mxu0 %v78
    %99 = vmatprep.subr.mxu0 0.0
    %100 = vmatpush1.msra.mxu0 %v77
    %101 = vmatprep.subr.mxu0 0.0
    %102 = vmatpush1.msra.mxu0 %v76
    %103 = vmatprep.subr.mxu0 0.0
    %104 = vmatpush1.msra.mxu0 %v75
    %105 = vmatprep.subr.mxu0 0.0
    %106 = vmatpush1.msra.mxu0 %v74
    %107 = vmatprep.subr.mxu0 0.0
    %108 = vmatpush1.msra.mxu0 %v73
    %109 = vmatprep.subr.mxu0 0.0
    %110 = vmatpush1.msra.mxu0 %v72
    %111 = vmatprep.subr.mxu0 0.0
    %112 = vmatpush1.msra.mxu0 %v71
    %113 = vmatprep.subr.mxu0 0.0
    %114 = vmatpush1.msra.mxu0 %v70
    %115 = vmatprep.subr.mxu0 0.0
    %116 = vmatpush1.msra.mxu0 %v69
    %117 = vmatprep.subr.mxu0 0.0
    %118 = vmatpush2.msra.mxu0 0.0
    %119 = vmatprep.subr.mxu0 0.0
    %120 = vmatpush2.msra.mxu0 0.0
    %121 = vmatprep.subr.mxu0 0.0
    %122 = vmatpush2.msra.mxu0 0.0
    %123 = vmatprep.subr.mxu0 0.0
    %124 = vmatpush2.msra.mxu0 0.0
    %125 = vmatprep.subr.mxu0 0.0
    %126 = vmatpush2.msra.mxu0 0.0
    %127 = vmatprep.subr.mxu0 0.0
    %128 = vmatpush2.msra.mxu0 0.0
    %129 = vmatprep.subr.mxu0 0.0
    %130 = vmatpush2.msra.mxu0 0.0
    %131 = vmatprep.subr.mxu0 0.0
    %132 = vmatpush2.msra.mxu0 0.0
    %133 = vmatprep.subr.mxu0 0.0
    %134 = vmatpush2.msra.mxu0 0.0
    %135 = vmatprep.subr.mxu0 0.0
    %136 = vmatpush2.msra.mxu0 0.0
    %137 = vmatprep.subr.mxu0 0.0
    %138 = vmatpush2.msra.mxu0 0.0
    %139 = vmatprep.subr.mxu0 0.0
    %140 = vmatpush2.msra.mxu0 0.0
    %141 = vmatprep.subr.mxu0 0.0
    %142 = vmatpush2.msra.mxu0 0.0
    %143 = vmatprep.subr.mxu0 0.0
    %144 = vmatpush2.msra.mxu0 0.0
    %145 = vmatprep.subr.mxu0 0.0
    %146 = vmatpush2.msra.mxu0 0.0
    %147 = vmatprep.subr.mxu0 0.0
    %148 = vmatpush2.msra.mxu0 0.0
    %149 = vmatprep.mubr.f32.mxu0 0.0
    %150 = vmatmul.mubr.f32.gmra.mxu0 %v68
    %v151 = vpop.f32.mrf.mxu0
    %v152 = vadd.f32 0.0, %v151
    %v153 = vpop.f32.mrf.mxu0
    %154 = vdwg.mxu0
    %v155 = vrot.slane %v152, 4
    %v156 = vadd.f32 %v152, %v155
    %v157 = vrot.slane %v156, 2
    %v158 = vadd.f32 %v156, %v157
    %v159 = vrot.slane %v158, 1
    %v160 = vadd.f32 %v158, %v159
    %v161 = vmul.f32 %v160, 0.125
    %v162 = vsub.f32 %v152, %v161
    %v163 = vmul.f32 %v162, %v162
    %v164 = vrot.slane %v163, 4
    %v165 = vadd.f32 %v163, %v164
    %v166 = vrot.slane %v165, 2
    %v167 = vadd.f32 %v165, %v166
    %v168 = vrot.slane %v167, 1
    %v169 = vadd.f32 %v167, %v168
    %v170 = vmul.f32 %v169, 0.125
    %v171 = vld [vmem:[%s2] sm:$0x3]
    %v172 = vadd.f32 %v170, 1e-05
    %v173 = vrsqrt.pop %v172
    %v174 = vmul.f32 %v173, %v171
    %v175 = vlaneseq
    %v176 = vshrl.u32 %v175, 7
    %v177 = vsub.s32 0, %v176
    %v178 = vrot.slane %v174, %v177
    %v179 = vmul.f32 %v162, %v178
    %v180 = vlaneseq
    %v181 = vshrl.u32 %v180, 7
    %v182 = vsub.s32 1, %v181
    %v183 = vrot.slane %v171, %v182
    %v184 = vadd.f32 %v179, %v183
    %v185 = vmax.f32 %v184, 0.0
    %v186 = vld [vmem:[#allocation5] sm:$0xff]
    %v187 = vld [vmem:[#allocation5 + $0x8] sm:$0xff]
    %v188 = vld [vmem:[#allocation5 + $0x10] sm:$0xff]
    %v189 = vld [vmem:[#allocation5 + $0x18] sm:$0xff]
    %v190 = vld [vmem:[#allocation5 + $0x20] sm:$0xff]
    %v191 = vld [vmem:[#allocation5 + $0x28] sm:$0xff]
    %v192 = vld [vmem:[#allocation5 + $0x30] sm:$0xff]
    %v193 = vld [vmem:[#allocation5 + $0x38] sm:$0xff]
    %v194 = vld [vmem:[#allocation5 + $0x40] sm:$0xff]
    %v195 = vld [vmem:[#allocation5 + $0x48] sm:$0xff]
    %v196 = vld [vmem:[#allocation5 + $0x50] sm:$0xff]
    %v197 = vld [vmem:[#allocation5 + $0x58] sm:$0xff]
    %v198 = vld [vmem:[#allocation5 + $0x60] sm:$0xff]
    %v199 = vld [vmem:[#allocation5 + $0x68] sm:$0xff]
    %v200 = vld [vmem:[#allocation5 + $0x70] sm:$0xff]
    %v201 = vld [vmem:[#allocation5 + $0x78] sm:$0xff]
    %202 = vmatprep.subr.mxu0 0.0
    %203 = vmatpush1.msra.mxu0 %v201
    %204 = vmatprep.subr.mxu0 0.0
    %205 = vmatpush1.msra.mxu0 %v200
    %206 = vmatprep.subr.mxu0 0.0
    %207 = vmatpush1.msra.mxu0 %v199
    %208 = vmatprep.subr.mxu0 0.0
    %209 = vmatpush1.msra.mxu0 %v198
    %210 = vmatprep.subr.mxu0 0.0
    %211 = vmatpush1.msra.mxu0 %v197
    %212 = vmatprep.subr.mxu0 0.0
    %213 = vmatpush1.msra.mxu0 %v196
    %214 = vmatprep.subr.mxu0 0.0
    %215 = vmatpush1.msra.mxu0 %v195
    %216 = vmatprep.subr.mxu0 0.0
    %217 = vmatpush1.msra.mxu0 %v194
    %218 = vmatprep.subr.mxu0 0.0
    %219 = vmatpush1.msra.mxu0 %v193
    %220 = vmatprep.subr.mxu0 0.0
    %221 = vmatpush1.msra.mxu0 %v192
    %222 = vmatprep.subr.mxu0 0.0
    %223 = vmatpush1.msra.mxu0 %v191
    %224 = vmatprep.subr.mxu0 0.0
    %225 = vmatpush1.msra.mxu0 %v190
    %226 = vmatprep.subr.mxu0 0.0
    %227 = vmatpush1.msra.mxu0 %v189
    %228 = vmatprep.subr.mxu0 0.0
    %229 = vmatpush1.msra.mxu0 %v188
    %230 = vmatprep.subr.mxu0 0.0
    %231 = vmatpush1.msra.mxu0 %v187
    %232 = vmatprep.subr.mxu0 0.0
    %233 = vmatpush1.msra.mxu0 %v186
    %234 = vmatprep.subr.mxu0 0.0
    %235 = vmatpush2.msra.mxu0 0.0
    %236 = vmatprep.subr.mxu0 0.0
    %237 = vmatpush2.msra.mxu0 0.0
    %238 = vmatprep.subr.mxu0 0.0
    %239 = vmatpush2.msra.mxu0 0.0
    %240 = vmatprep.subr.mxu0 0.0
    %241 = vmatpush2.msra.mxu0 0.0
    %242 = vmatprep.subr.mxu0 0.0
    %243 = vmatpush2.msra.mxu0 0.0
    %244 = vmatprep.subr.mxu0 0.0
    %245 = vmatpush2.msra.mxu0 0.0
    %246 = vmatprep.subr.mxu0 0.0
    %247 = vmatpush2.msra.mxu0 0.0
    %248 = vmatprep.subr.mxu0 0.0
    %249 = vmatpush2.msra.mxu0 0.0
    %250 = vmatprep.subr.mxu0 0.0
    %251 = vmatpush2.msra.mxu0 0.0
    %252 = vmatprep.subr.mxu0 0.0
    %253 = vmatpush2.msra.mxu0 0.0
    %254 = vmatprep.subr.mxu0 0.0
    %255 = vmatpush2.msra.mxu0 0.0
    %256 = vmatprep.subr.mxu0 0.0
    %257 = vmatpush2.msra.mxu0 0.0
    %258 = vmatprep.subr.mxu0 0.0
    %259 = vmatpush2.msra.mxu0 0.0
    %260 = vmatprep.subr.mxu0 0.0
    %261 = vmatpush2.msra.mxu0 0.0
    %262 = vmatprep.subr.mxu0 0.0
    %263 = vmatpush2.msra.mxu0 0.0
    %264 = vmatprep.subr.mxu0 0.0
    %265 = vmatpush2.msra.mxu0 0.0
    %266 = vmatprep.mubr.f32.mxu0 0.0
    %267 = vmatmul.mubr.f32.gmra.mxu0 %v185
    %v268 = vpop.f32.mrf.mxu0
    %v269 = vadd.f32 0.0, %v268
    %v270 = vpop.f32.mrf.mxu0
    %271 = vdwg.mxu0
    %v272 = vrot.slane %v269, 4
    %v273 = vadd.f32 %v269, %v272
    %v274 = vrot.slane %v273, 2
    %v275 = vadd.f32 %v273, %v274
    %v276 = vrot.slane %v275, 1
    %v277 = vadd.f32 %v275, %v276
    %v278 = vmul.f32 %v277, 0.125
    %v279 = vsub.f32 %v269, %v278
    %v280 = vmul.f32 %v279, %v279
    %v281 = vrot.slane %v280, 4
    %v282 = vadd.f32 %v280, %v281
    %v283 = vrot.slane %v282, 2
    %v284 = vadd.f32 %v282, %v283
    %v285 = vrot.slane %v284, 1
    %v286 = vadd.f32 %v284, %v285
    %v287 = vmul.f32 %v286, 0.125
    %v288 = vld [vmem:[%s4] sm:$0x3]
    %v289 = vadd.f32 %v287, 1e-05
    %v290 = vrsqrt.pop %v289
    %v291 = vmul.f32 %v290, %v288
    %v292 = vlaneseq
    %v293 = vshrl.u32 %v292, 7
    %v294 = vsub.s32 0, %v293
    %v295 = vrot.slane %v291, %v294
    %v296 = vmul.f32 %v279, %v295
    %v297 = vlaneseq
    %v298 = vshrl.u32 %v297, 7
    %v299 = vsub.s32 1, %v298
    %v300 = vrot.slane %v288, %v299
    %v301 = vadd.f32 %v296, %v300
    %v302 = vmax.f32 %v301, 0.0
    %v303 = vld [vmem:[#allocation7] sm:$0xff]
    %v304 = vld [vmem:[#allocation7 + $0x8] sm:$0xff]
    %v305 = vld [vmem:[#allocation7 + $0x10] sm:$0xff]
    %v306 = vld [vmem:[#allocation7 + $0x18] sm:$0xff]
    %v307 = vld [vmem:[#allocation7 + $0x20] sm:$0xff]
    %v308 = vld [vmem:[#allocation7 + $0x28] sm:$0xff]
    %v309 = vld [vmem:[#allocation7 + $0x30] sm:$0xff]
    %v310 = vld [vmem:[#allocation7 + $0x38] sm:$0xff]
    %v311 = vld [vmem:[#allocation7 + $0x40] sm:$0xff]
    %v312 = vld [vmem:[#allocation7 + $0x48] sm:$0xff]
    %v313 = vld [vmem:[#allocation7 + $0x50] sm:$0xff]
    %v314 = vld [vmem:[#allocation7 + $0x58] sm:$0xff]
    %v315 = vld [vmem:[#allocation7 + $0x60] sm:$0xff]
    %v316 = vld [vmem:[#allocation7 + $0x68] sm:$0xff]
    %v317 = vld [vmem:[#allocation7 + $0x70] sm:$0xff]
    %v318 = vld [vmem:[#allocation7 + $0x78] sm:$0xff]
    %v319 = vld [vmem:[%s6] sm:$0x1]
    %v321 = vlaneseq
    %v322 = vshrl.u32 %v321, 7
    %v323 = vsub.s32 0, %v322
    %v324 = vrot.slane %v319, %v323
    %326 = vmatprep.subr.mxu0 0.0
    %327 = vmatpush1.msra.mxu0 %v318
    %328 = vmatprep.subr.mxu0 0.0
    %329 = vmatpush1.msra.mxu0 %v317
    %330 = vmatprep.subr.mxu0 0.0
    %331 = vmatpush1.msra.mxu0 %v316
    %332 = vmatprep.subr.mxu0 0.0
    %333 = vmatpush1.msra.mxu0 %v315
    %334 = vmatprep.subr.mxu0 0.0
    %335 = vmatpush1.msra.mxu0 %v314
    %336 = vmatprep.subr.mxu0 0.0
    %337 = vmatpush1.msra.mxu0 %v313
    %338 = vmatprep.subr.mxu0 0.0
    %339 = vmatpush1.msra.mxu0 %v312
    %340 = vmatprep.subr.mxu0 0.0
    %341 = vmatpush1.msra.mxu0 %v311
    %342 = vmatprep.subr.mxu0 0.0
    %343 = vmatpush1.msra.mxu0 %v310
    %344 = vmatprep.subr.mxu0 0.0
    %345 = vmatpush1.msra.mxu0 %v309
    %346 = vmatprep.subr.mxu0 0.0
    %347 = vmatpush1.msra.mxu0 %v308
    %348 = vmatprep.subr.mxu0 0.0
    %349 = vmatpush1.msra.mxu0 %v307
    %350 = vmatprep.subr.mxu0 0.0
    %351 = vmatpush1.msra.mxu0 %v306
    %352 = vmatprep.subr.mxu0 0.0
    %353 = vmatpush1.msra.mxu0 %v305
    %354 = vmatprep.subr.mxu0 0.0
    %355 = vmatpush1.msra.mxu0 %v304
    %356 = vmatprep.subr.mxu0 0.0
    %357 = vmatpush1.msra.mxu0 %v303
    %358 = vmatprep.subr.mxu0 0.0
    %359 = vmatpush2.msra.mxu0 0.0
    %360 = vmatprep.subr.mxu0 0.0
    %361 = vmatpush2.msra.mxu0 0.0
    %362 = vmatprep.subr.mxu0 0.0
    %363 = vmatpush2.msra.mxu0 0.0
    %364 = vmatprep.subr.mxu0 0.0
    %365 = vmatpush2.msra.mxu0 0.0
    %366 = vmatprep.subr.mxu0 0.0
    %367 = vmatpush2.msra.mxu0 0.0
    %368 = vmatprep.subr.mxu0 0.0
    %369 = vmatpush2.msra.mxu0 0.0
    %370 = vmatprep.subr.mxu0 0.0
    %371 = vmatpush2.msra.mxu0 0.0
    %372 = vmatprep.subr.mxu0 0.0
    %373 = vmatpush2.msra.mxu0 0.0
    %374 = vmatprep.subr.mxu0 0.0
    %375 = vmatpush2.msra.mxu0 0.0
    %376 = vmatprep.subr.mxu0 0.0
    %377 = vmatpush2.msra.mxu0 0.0
    %378 = vmatprep.subr.mxu0 0.0
    %379 = vmatpush2.msra.mxu0 0.0
    %380 = vmatprep.subr.mxu0 0.0
    %381 = vmatpush2.msra.mxu0 0.0
    %382 = vmatprep.subr.mxu0 0.0
    %383 = vmatpush2.msra.mxu0 0.0
    %384 = vmatprep.subr.mxu0 0.0
    %385 = vmatpush2.msra.mxu0 0.0
    %386 = vmatprep.subr.mxu0 0.0
    %387 = vmatpush2.msra.mxu0 0.0
    %388 = vmatprep.subr.mxu0 0.0
    %389 = vmatpush2.msra.mxu0 0.0
    %390 = vmatprep.mubr.f32.mxu0 0.0
    %391 = vmatmul.mubr.f32.gmra.mxu0 %v302
    %v392 = vpop.f32.mrf.mxu0
    %v393 = vadd.f32 %v324, %v392
    %v394 = vpop.f32.mrf.mxu0
    %395 = vdwg.mxu0
    %396 = vst [vmem:[#allocation8] sm:$0xff] %v393
    // Predicated region
    $region42: #{mlp_forward.1} parent=1 // pred_check
      _
    $region43: #{mlp_forward.1} parent=1 // pred_check_branch
      %398 = sbr.rel (0) target = $region45
    $region44: #{mlp_forward.1} parent=1 // pred_region
      %s400 = ssub.s32 128, 128
      %401 = vsyncadd [#allocation4], %s400
      %s403 = sshll.u32 [#allocation8], 4
      %s404 = int_to_ptr.vmem [resolvable:$true] %s403
      %406 = dma.vmem_to_hbm [thread:$0]  %s404, 128, %s7, [#allocation4]
    $region45: #{mlp_forward.1} parent=1 // pred_fallthru
      _
    // Predicated region
    $region46: #{mlp_forward.1} parent=1 // pred_check
      _
    $region47: #{mlp_forward.1} parent=1 // pred_check_branch
      %408 = sbr.rel (0) target = $region49
    $region48: #{mlp_forward.1} parent=1 // pred_region
      %409 = dma.done [#allocation4], 128
    $region49: #{mlp_forward.1} parent=1 // pred_fallthru
      _
    %410 = vsyncpa [#allocation3], 1
    %411 = vsyncpa [#allocation6], 1
    %412 = vsyncpa [#allocation4], 1

</llo_original>
